<compile_context>
chip_gen: v7x
topology: tpu7x:2x2x1
jax: 0.10.0
libtpu: 0.0.40
codegen_flags: <defaults>
</compile_context>

<pallas_src>
import functools

import jax
import jax.numpy as jnp
from jax.experimental import pallas as pl
from jax.experimental.pallas import tpu as pltpu

_NEG_INF = -1e30  # bias for padded class lanes -> zero softmax mass


def _leaky_relu(v, slope=0.01):
    # For 0 < slope < 1, max(v, slope*v) == LeakyReLU(v); saves a compare+select.
    return jnp.maximum(v, slope * v)


def _cdiv(a, b):
    return -(-a // b)


def _round_up(x, m):
    return _cdiv(x, m) * m


def _row_multiple(dtype):
    """Sublane packing granularity for the batch (second-minor) dim."""
    bits = jnp.dtype(dtype).itemsize * 8
    if bits >= 32:
        return 8
    if bits == 16:
        return 16
    return 32


def _vmem_capacity_bytes():
    """Per-core VMEM capacity; conservative 64 MiB (v7x/TC) if unknown."""
    try:
        info = pltpu.get_tpu_info()
        cap = getattr(info, "vmem_capacity_bytes", None)
        if cap:
            return int(cap)
    except Exception:
        pass
    return 64 << 20


def myfc_kernel(x_ref,
                w1_ref, b1_ref,
                w2_ref, b2_ref,
                w3_ref, b3_ref,
                w4_ref, b4_ref,
                w5_ref, b5_ref,
                o_ref, *, exact_softmax=False):
    """One batch tile: 4x (Linear + LeakyReLU), final Linear, softmax over the
    lane-padded class dim.  Matmuls accumulate in f32 on the MXU; activations
    stay f32 between layers and are cast to the weight dtype only at the dot
    inputs (a no-op when matmul_dtype == f32).  The x tile is cast in-kernel
    (VPU filler hidden under the MXU) so the wrapper never re-writes x."""
    mm = w1_ref.dtype

    h = jnp.dot(x_ref[...].astype(mm), w1_ref[...],
                preferred_element_type=jnp.float32) + b1_ref[...]
    h = _leaky_relu(h)
    h = _leaky_relu(jnp.dot(h.astype(mm), w2_ref[...],
                            preferred_element_type=jnp.float32) + b2_ref[...])
    h = _leaky_relu(jnp.dot(h.astype(mm), w3_ref[...],
                            preferred_element_type=jnp.float32) + b3_ref[...])
    h = _leaky_relu(jnp.dot(h.astype(mm), w4_ref[...],
                            preferred_element_type=jnp.float32) + b4_ref[...])

    logits = jnp.dot(h.astype(mm), w5_ref[...],
                     preferred_element_type=jnp.float32) + b5_ref[...]

    # Numerically-stable softmax; padded class lanes carry a -1e30 bias so
    # their exp underflows to 0 and normalization matches torch.Softmax(dim=1).
    m = jnp.max(logits, axis=-1, keepdims=True)
    e = jnp.exp(logits - m)
    s = jnp.sum(e, axis=-1, keepdims=True)
    if exact_softmax:
        p = e / s
    else:
        p = e * pl.reciprocal(s, approx=True)   # EUP slot, ~free
    o_ref[...] = p.astype(o_ref.dtype)


def myfc_forward(x, params, *, batch_tile=512, matmul_dtype=jnp.bfloat16,
                 out_dtype=jnp.float32, exact_softmax=False, x_buffers=2,
                 vmem_reserve_bytes=8 << 20):
    """Fused forward of myFC.

    x: (B, D_in) float32.  params: list of (W_t, b) with W_t shaped (in, out)
    (pre-transposed PyTorch weight), b shaped (1, out).
    Returns softmax probabilities (B, class_num) in `out_dtype`.

    matmul_dtype=bf16 (default) is the right call on v5e/v6e/v7x: bf16 MXU
    inputs with f32 accumulation, while bias/LeakyReLU/softmax stay f32.
    Note (v7x): resident weights are duplicated per TensorCore when the batch
    grid is sharded across the 2 TCs, so the VMEM budget below is per-TC.
    """
    B, D_in = x.shape
    (w1, b1), (w2, b2), (w3, b3), (w4, b4), (w5, b5) = params
    class_num = w5.shape[1]

    # ---- lane-dense output: pad class dim to a multiple of 128 -------------
    c_pad = _round_up(class_num, 128)
    w5p = jnp.zeros((w5.shape[0], c_pad), w5.dtype).at[:, :class_num].set(w5)
    b5p = jnp.full((1, c_pad), _NEG_INF, jnp.float32).at[:, :class_num].set(
        b5.astype(jnp.float32))

    # Weights/biases cast once (they are VMEM-resident, constant over the grid).
    # x is NOT cast here: the kernel casts the streamed tile in place.
    ws = [w.astype(matmul_dtype) for w in (w1, w2, w3, w4, w5p)]
    bs = [b.astype(jnp.float32) for b in (b1, b2, b3, b4, b5p)]

    # ---- generation-aware VMEM budget --------------------------------------
    mm_itemsize = jnp.dtype(matmul_dtype).itemsize
    out_itemsize = jnp.dtype(out_dtype).itemsize
    resident_bytes = (sum(int(w.size) * mm_itemsize for w in ws)
                      + sum(int(b.size) * 4 for b in bs))

    vmem_cap = _vmem_capacity_bytes()
    budget = vmem_cap - int(vmem_reserve_bytes)

    max_dim = max(D_in, *(int(w.shape[1]) for w in ws))
    x_bufs = max(2, int(x_buffers))
    per_row_bytes = (x_bufs * D_in * x.dtype.itemsize      # pipelined x block(s)
                     + 2 * c_pad * out_itemsize            # double-buffered out
                     + 4 * max_dim * 4)                    # f32 intermediates headroom
    row_mult = _row_multiple(matmul_dtype)

    tile_budget = budget - resident_bytes
    if tile_budget < row_mult * per_row_bytes:
        # TODO(synk): when resident weights alone overflow per-core VMEM
        # (v7x: 64 MiB/TC), stream the largest layer(s) with a K/N-blocked
        # pltpu.emit_pipeline instead of whole-array residency.
        raise ValueError(
            f"Resident weights ({resident_bytes / 2**20:.1f} MiB) leave no room for a "
            f"{row_mult}-row batch tile within the {budget / 2**20:.1f} MiB per-core VMEM "
            "budget; use matmul_dtype=jnp.bfloat16 or a streaming-weights variant.")

    cap_from_budget = max(row_mult, (tile_budget // per_row_bytes) // row_mult * row_mult)
    cap_tile = max(row_mult, (min(int(batch_tile), int(cap_from_budget)) // row_mult) * row_mult)

    # ---- balanced batch tiles; >= 2 grid steps when B allows (v7x 2-TC) ----
    num_tiles = max(1, _cdiv(B, cap_tile))
    if num_tiles == 1 and B > row_mult:
        num_tiles = 2                      # keeps both v7x TCs busy; no-op on 1-TC chips
    tile = min(cap_tile, _round_up(_cdiv(B, num_tiles), row_mult))
    num_tiles = _cdiv(B, tile)
    b_pad = num_tiles * tile
    if b_pad != B:
        x = jnp.pad(x, ((0, b_pad - B), (0, 0)))

    vmem_limit_bytes = int(min(vmem_cap - (2 << 20),
                               max(resident_bytes + tile * per_row_bytes + (2 << 20),
                                   32 << 20)))

    # ---- specs --------------------------------------------------------------
    grid = (num_tiles,)

    def resident_spec():
        # Constant across the grid: whole array kept resident in VMEM,
        # no per-step pipelining buffers.
        return pl.BlockSpec(memory_space=pltpu.MemorySpace.VMEM)

    if int(x_buffers) > 2:
        # Only useful in the HBM-bound regime (tiny hidden dims, huge B).
        x_spec = pl.BlockSpec((tile, D_in), lambda i: (i, 0),
                              pipeline_mode=pl.Buffered(int(x_buffers)))
    else:
        x_spec = pl.BlockSpec((tile, D_in), lambda i: (i, 0))

    in_specs = [x_spec]
    for _ in range(5):
        in_specs += [resident_spec(), resident_spec()]

    out_spec = pl.BlockSpec((tile, c_pad), lambda i: (i, 0))

    # ---- advisory cost estimate ---------------------------------------------
    flops = 2 * b_pad * sum(int(w.shape[0]) * int(w.shape[1]) for w in ws)
    bytes_in = (int(x.size) * x.dtype.itemsize
                + sum(int(a.size) * a.dtype.itemsize for a in ws + bs))
    bytes_out = b_pad * c_pad * out_itemsize
    cost = pl.CostEstimate(flops=flops,
                           transcendentals=b_pad * (c_pad + 1),
                           bytes_accessed=bytes_in + bytes_out)

    kernel = functools.partial(myfc_kernel, exact_softmax=exact_softmax)

    out = pl.pallas_call(
        kernel,
        out_shape=jax.ShapeDtypeStruct((b_pad, c_pad), out_dtype),
        grid_spec=pltpu.PrefetchScalarGridSpec(
            num_scalar_prefetch=0,
            grid=grid,
            in_specs=in_specs,
            out_specs=out_spec,
        ),
        compiler_params=pltpu.CompilerParams(
            dimension_semantics=("parallel",),
            vmem_limit_bytes=vmem_limit_bytes),
        cost_estimate=cost,
    )(x, ws[0], bs[0], ws[1], bs[1], ws[2], bs[2], ws[3], bs[3], ws[4], bs[4])

    return out[:B, :class_num]


def init_params(key, input_dim, hidden_dim, class_num):
    """Deterministic synthetic init.  Weight stored transposed: (in, out)."""
    dims = [input_dim, hidden_dim[0], hidden_dim[1], hidden_dim[1],
            hidden_dim[1], class_num]
    params = []
    for i in range(5):
        key, kw, kb = jax.random.split(key, 3)
        fan_in, fan_out = dims[i], dims[i + 1]
        w = jax.random.normal(kw, (fan_in, fan_out), jnp.float32) * 0.05
        b = jax.random.normal(kb, (1, fan_out), jnp.float32) * 0.01
        params.append((w, b))
    return params


def reference_forward(x, params):
    h = x
    for (w, b) in params[:-1]:
        h = _leaky_relu(h @ w + b)
    w, b = params[-1]
    logits = h @ w + b
    return jax.nn.softmax(logits, axis=1)


if __name__ == "__main__":
    # Small shapes consistent with the module (input_dim -> 4 hidden -> class_num)
    B, D_IN, HIDDEN, CLASS_NUM = 16, 128, [128, 128], 2

    key = jax.random.PRNGKey(0)
    key, kx = jax.random.split(key)
    x = jax.random.normal(kx, (B, D_IN), jnp.float32)

    params = init_params(key, D_IN, HIDDEN, CLASS_NUM)
    ref = reference_forward(x, params)

    # Default path: bf16 matmul inputs, f32 accumulation / elementwise / output.
    out_bf16 = jax.block_until_ready(myfc_forward(x, params))
    assert out_bf16.shape == (B, CLASS_NUM)
    assert jnp.allclose(out_bf16, ref, atol=3e-2, rtol=3e-2)
    assert jnp.allclose(jnp.sum(out_bf16, axis=1), jnp.ones((B,)), atol=3e-3)

    # Exact f32 path (exact softmax divide) for bit-level parity checks.
    out_f32 = jax.block_until_ready(
        myfc_forward(x, params, matmul_dtype=jnp.float32, exact_softmax=True))
    assert out_f32.shape == (B, CLASS_NUM)
    assert jnp.allclose(out_f32, ref, atol=2e-3, rtol=2e-3)
    assert jnp.allclose(jnp.sum(out_f32, axis=1), jnp.ones((B,)), atol=1e-5)

    # Ragged batch exercises balanced-tile padding (B not a tile multiple).
    Bx = 20
    key, kx2 = jax.random.split(key)
    x2 = jax.random.normal(kx2, (Bx, D_IN), jnp.float32)
    ref2 = reference_forward(x2, params)
    out2 = jax.block_until_ready(
        myfc_forward(x2, params, matmul_dtype=jnp.float32, exact_softmax=True))
    assert out2.shape == (Bx, CLASS_NUM)
    assert jnp.allclose(out2, ref2, atol=2e-3, rtol=2e-3)

    print("KERNEL_OK")
</pallas_src>

<mosaic_0001>
module attributes {stable_mosaic.version = 11 : i64} {
  func.func @myfc_kernel(%arg0: i32, %arg1: memref<16x128xf32, #tpu.memory_space<vmem>>, %arg2: memref<128x128xbf16, #tpu.memory_space<vmem>>, %arg3: memref<1x128xf32, #tpu.memory_space<vmem>>, %arg4: memref<128x128xbf16, #tpu.memory_space<vmem>>, %arg5: memref<1x128xf32, #tpu.memory_space<vmem>>, %arg6: memref<128x128xbf16, #tpu.memory_space<vmem>>, %arg7: memref<1x128xf32, #tpu.memory_space<vmem>>, %arg8: memref<128x128xbf16, #tpu.memory_space<vmem>>, %arg9: memref<1x128xf32, #tpu.memory_space<vmem>>, %arg10: memref<128x128xbf16, #tpu.memory_space<vmem>>, %arg11: memref<1x128xf32, #tpu.memory_space<vmem>>, %arg12: memref<16x128xf32, #tpu.memory_space<vmem>>) attributes {dimension_semantics = [#tpu.dimension_semantics<parallel>], iteration_bounds = array<i64: 1>, scalar_prefetch = 0 : i64, scratch_operands = 0 : i64, tpu.core_type = #tpu.core_type<tc>, window_params = [{transform_indices = @transform_0, window_bounds = array<i64: 16, 128>}, {pipeline_mode = #tpu.pipeline_mode<synchronous>, transform_indices = @transform_1, window_bounds = array<i64: 128, 128>}, {pipeline_mode = #tpu.pipeline_mode<synchronous>, transform_indices = @transform_2, window_bounds = array<i64: 1, 128>}, {pipeline_mode = #tpu.pipeline_mode<synchronous>, transform_indices = @transform_3, window_bounds = array<i64: 128, 128>}, {pipeline_mode = #tpu.pipeline_mode<synchronous>, transform_indices = @transform_4, window_bounds = array<i64: 1, 128>}, {pipeline_mode = #tpu.pipeline_mode<synchronous>, transform_indices = @transform_5, window_bounds = array<i64: 128, 128>}, {pipeline_mode = #tpu.pipeline_mode<synchronous>, transform_indices = @transform_6, window_bounds = array<i64: 1, 128>}, {pipeline_mode = #tpu.pipeline_mode<synchronous>, transform_indices = @transform_7, window_bounds = array<i64: 128, 128>}, {pipeline_mode = #tpu.pipeline_mode<synchronous>, transform_indices = @transform_8, window_bounds = array<i64: 1, 128>}, {pipeline_mode = #tpu.pipeline_mode<synchronous>, transform_indices = @transform_9, window_bounds = array<i64: 128, 128>}, {pipeline_mode = #tpu.pipeline_mode<synchronous>, transform_indices = @transform_10, window_bounds = array<i64: 1, 128>}, {transform_indices = @transform_11, window_bounds = array<i64: 16, 128>}]} {
    %c0 = arith.constant 0 : index
    %c0_0 = arith.constant 0 : index
    %0 = vector.load %arg1[%c0, %c0_0] : memref<16x128xf32, #tpu.memory_space<vmem>>, vector<16x128xf32>
    %1 = arith.truncf %0 : vector<16x128xf32> to vector<16x128xbf16>
    %c0_1 = arith.constant 0 : index
    %c0_2 = arith.constant 0 : index
    %2 = vector.load %arg2[%c0_1, %c0_2] : memref<128x128xbf16, #tpu.memory_space<vmem>>, vector<128x128xbf16>
    %cst = arith.constant dense<0.000000e+00> : vector<16x128xf32>
    %3 = tpu.matmul %1, %2, %cst {dimension_numbers = #tpu.dot_dimension_numbers<[1], [0], [0], [1], [0, 0, 1, 1], [], []>} : vector<16x128xbf16>, vector<128x128xbf16>, vector<16x128xf32> -> vector<16x128xf32>
    %c0_3 = arith.constant 0 : index
    %c0_4 = arith.constant 0 : index
    %4 = vector.load %arg3[%c0_3, %c0_4] : memref<1x128xf32, #tpu.memory_space<vmem>>, vector<1x128xf32>
    %5 = vector.broadcast %4 : vector<1x128xf32> to vector<16x128xf32>
    %6 = arith.addf %3, %5 : vector<16x128xf32>
    %cst_5 = arith.constant 0.00999999977 : f32
    %7 = vector.broadcast %cst_5 : f32 to vector<16x128xf32>
    %8 = arith.mulf %7, %6 : vector<16x128xf32>
    %9 = arith.maximumf %6, %8 : vector<16x128xf32>
    %10 = arith.truncf %9 : vector<16x128xf32> to vector<16x128xbf16>
    %c0_6 = arith.constant 0 : index
    %c0_7 = arith.constant 0 : index
    %11 = vector.load %arg4[%c0_6, %c0_7] : memref<128x128xbf16, #tpu.memory_space<vmem>>, vector<128x128xbf16>
    %cst_8 = arith.constant dense<0.000000e+00> : vector<16x128xf32>
    %12 = tpu.matmul %10, %11, %cst_8 {dimension_numbers = #tpu.dot_dimension_numbers<[1], [0], [0], [1], [0, 0, 1, 1], [], []>} : vector<16x128xbf16>, vector<128x128xbf16>, vector<16x128xf32> -> vector<16x128xf32>
    %c0_9 = arith.constant 0 : index
    %c0_10 = arith.constant 0 : index
    %13 = vector.load %arg5[%c0_9, %c0_10] : memref<1x128xf32, #tpu.memory_space<vmem>>, vector<1x128xf32>
    %14 = vector.broadcast %13 : vector<1x128xf32> to vector<16x128xf32>
    %15 = arith.addf %12, %14 : vector<16x128xf32>
    %cst_11 = arith.constant 0.00999999977 : f32
    %16 = vector.broadcast %cst_11 : f32 to vector<16x128xf32>
    %17 = arith.mulf %16, %15 : vector<16x128xf32>
    %18 = arith.maximumf %15, %17 : vector<16x128xf32>
    %19 = arith.truncf %18 : vector<16x128xf32> to vector<16x128xbf16>
    %c0_12 = arith.constant 0 : index
    %c0_13 = arith.constant 0 : index
    %20 = vector.load %arg6[%c0_12, %c0_13] : memref<128x128xbf16, #tpu.memory_space<vmem>>, vector<128x128xbf16>
    %cst_14 = arith.constant dense<0.000000e+00> : vector<16x128xf32>
    %21 = tpu.matmul %19, %20, %cst_14 {dimension_numbers = #tpu.dot_dimension_numbers<[1], [0], [0], [1], [0, 0, 1, 1], [], []>} : vector<16x128xbf16>, vector<128x128xbf16>, vector<16x128xf32> -> vector<16x128xf32>
    %c0_15 = arith.constant 0 : index
    %c0_16 = arith.constant 0 : index
    %22 = vector.load %arg7[%c0_15, %c0_16] : memref<1x128xf32, #tpu.memory_space<vmem>>, vector<1x128xf32>
    %23 = vector.broadcast %22 : vector<1x128xf32> to vector<16x128xf32>
    %24 = arith.addf %21, %23 : vector<16x128xf32>
    %cst_17 = arith.constant 0.00999999977 : f32
    %25 = vector.broadcast %cst_17 : f32 to vector<16x128xf32>
    %26 = arith.mulf %25, %24 : vector<16x128xf32>
    %27 = arith.maximumf %24, %26 : vector<16x128xf32>
    %28 = arith.truncf %27 : vector<16x128xf32> to vector<16x128xbf16>
    %c0_18 = arith.constant 0 : index
    %c0_19 = arith.constant 0 : index
    %29 = vector.load %arg8[%c0_18, %c0_19] : memref<128x128xbf16, #tpu.memory_space<vmem>>, vector<128x128xbf16>
    %cst_20 = arith.constant dense<0.000000e+00> : vector<16x128xf32>
    %30 = tpu.matmul %28, %29, %cst_20 {dimension_numbers = #tpu.dot_dimension_numbers<[1], [0], [0], [1], [0, 0, 1, 1], [], []>} : vector<16x128xbf16>, vector<128x128xbf16>, vector<16x128xf32> -> vector<16x128xf32>
    %c0_21 = arith.constant 0 : index
    %c0_22 = arith.constant 0 : index
    %31 = vector.load %arg9[%c0_21, %c0_22] : memref<1x128xf32, #tpu.memory_space<vmem>>, vector<1x128xf32>
    %32 = vector.broadcast %31 : vector<1x128xf32> to vector<16x128xf32>
    %33 = arith.addf %30, %32 : vector<16x128xf32>
    %cst_23 = arith.constant 0.00999999977 : f32
    %34 = vector.broadcast %cst_23 : f32 to vector<16x128xf32>
    %35 = arith.mulf %34, %33 : vector<16x128xf32>
    %36 = arith.maximumf %33, %35 : vector<16x128xf32>
    %37 = arith.truncf %36 : vector<16x128xf32> to vector<16x128xbf16>
    %c0_24 = arith.constant 0 : index
    %c0_25 = arith.constant 0 : index
    %38 = vector.load %arg10[%c0_24, %c0_25] : memref<128x128xbf16, #tpu.memory_space<vmem>>, vector<128x128xbf16>
    %cst_26 = arith.constant dense<0.000000e+00> : vector<16x128xf32>
    %39 = tpu.matmul %37, %38, %cst_26 {dimension_numbers = #tpu.dot_dimension_numbers<[1], [0], [0], [1], [0, 0, 1, 1], [], []>} : vector<16x128xbf16>, vector<128x128xbf16>, vector<16x128xf32> -> vector<16x128xf32>
    %c0_27 = arith.constant 0 : index
    %c0_28 = arith.constant 0 : index
    %40 = vector.load %arg11[%c0_27, %c0_28] : memref<1x128xf32, #tpu.memory_space<vmem>>, vector<1x128xf32>
    %41 = vector.broadcast %40 : vector<1x128xf32> to vector<16x128xf32>
    %42 = arith.addf %39, %41 : vector<16x128xf32>
    %cst_29 = arith.constant dense<0xFF800000> : vector<16xf32>
    %43 = vector.multi_reduction <maximumf>, %42, %cst_29 [1] : vector<16x128xf32> to vector<16xf32>
    %44 = vector.shape_cast %43 : vector<16xf32> to vector<16x1xf32>
    %45 = vector.broadcast %44 : vector<16x1xf32> to vector<16x128xf32>
    %46 = arith.subf %42, %45 : vector<16x128xf32>
    %47 = math.exp %46 : vector<16x128xf32>
    %cst_30 = arith.constant dense<0.000000e+00> : vector<16xf32>
    %48 = vector.multi_reduction <add>, %47, %cst_30 [1] : vector<16x128xf32> to vector<16xf32>
    %49 = vector.shape_cast %48 : vector<16xf32> to vector<16x1xf32>
    %50 = tpu.reciprocal %49 {approx = true} : vector<16x1xf32> -> vector<16x1xf32>
    %51 = vector.broadcast %50 : vector<16x1xf32> to vector<16x128xf32>
    %52 = arith.mulf %47, %51 : vector<16x128xf32>
    %c0_31 = arith.constant 0 : index
    %c0_32 = arith.constant 0 : index
    %53 = vector.load %arg12[%c0_31, %c0_32] : memref<16x128xf32, #tpu.memory_space<vmem>>, vector<16x128xf32>
    tpu.vector_store %arg12[%c0_31, %c0_32], %52 {strides = array<i32>} : memref<16x128xf32, #tpu.memory_space<vmem>>, vector<16x128xf32>,
    return
  }
  func.func @transform_0(%arg0: i32) -> (i32, i32) {
    %c0_i32 = arith.constant 0 : i32
    %c0_i32_0 = arith.constant 0 : i32
    return %arg0, %c0_i32 : i32, i32
  }
  func.func @transform_1(%arg0: i32) -> (i32, i32) {
    %c0_i32 = arith.constant 0 : i32
    %c0_i32_0 = arith.constant 0 : i32
    %c0_i32_1 = arith.constant 0 : i32
    return %c0_i32, %c0_i32_0 : i32, i32
  }
  func.func @transform_2(%arg0: i32) -> (i32, i32) {
    %c0_i32 = arith.constant 0 : i32
    %c0_i32_0 = arith.constant 0 : i32
    %c0_i32_1 = arith.constant 0 : i32
    return %c0_i32, %c0_i32_0 : i32, i32
  }
  func.func @transform_3(%arg0: i32) -> (i32, i32) {
    %c0_i32 = arith.constant 0 : i32
    %c0_i32_0 = arith.constant 0 : i32
    %c0_i32_1 = arith.constant 0 : i32
    return %c0_i32, %c0_i32_0 : i32, i32
  }
  func.func @transform_4(%arg0: i32) -> (i32, i32) {
    %c0_i32 = arith.constant 0 : i32
    %c0_i32_0 = arith.constant 0 : i32
    %c0_i32_1 = arith.constant 0 : i32
    return %c0_i32, %c0_i32_0 : i32, i32
  }
  func.func @transform_5(%arg0: i32) -> (i32, i32) {
    %c0_i32 = arith.constant 0 : i32
    %c0_i32_0 = arith.constant 0 : i32
    %c0_i32_1 = arith.constant 0 : i32
    return %c0_i32, %c0_i32_0 : i32, i32
  }
  func.func @transform_6(%arg0: i32) -> (i32, i32) {
    %c0_i32 = arith.constant 0 : i32
    %c0_i32_0 = arith.constant 0 : i32
    %c0_i32_1 = arith.constant 0 : i32
    return %c0_i32, %c0_i32_0 : i32, i32
  }
  func.func @transform_7(%arg0: i32) -> (i32, i32) {
    %c0_i32 = arith.constant 0 : i32
    %c0_i32_0 = arith.constant 0 : i32
    %c0_i32_1 = arith.constant 0 : i32
    return %c0_i32, %c0_i32_0 : i32, i32
  }
  func.func @transform_8(%arg0: i32) -> (i32, i32) {
    %c0_i32 = arith.constant 0 : i32
    %c0_i32_0 = arith.constant 0 : i32
    %c0_i32_1 = arith.constant 0 : i32
    return %c0_i32, %c0_i32_0 : i32, i32
  }
  func.func @transform_9(%arg0: i32) -> (i32, i32) {
    %c0_i32 = arith.constant 0 : i32
    %c0_i32_0 = arith.constant 0 : i32
    %c0_i32_1 = arith.constant 0 : i32
    return %c0_i32, %c0_i32_0 : i32, i32
  }
  func.func @transform_10(%arg0: i32) -> (i32, i32) {
    %c0_i32 = arith.constant 0 : i32
    %c0_i32_0 = arith.constant 0 : i32
    %c0_i32_1 = arith.constant 0 : i32
    return %c0_i32, %c0_i32_0 : i32, i32
  }
  func.func @transform_11(%arg0: i32) -> (i32, i32) {
    %c0_i32 = arith.constant 0 : i32
    %c0_i32_0 = arith.constant 0 : i32
    return %arg0, %c0_i32 : i32, i32
  }
}

</mosaic_0001>

<llo_original>
// kernel: tpu_custom_call.1
$region0: #{tpu_custom_call.1}
  #allocation0 [shape = 'u32[]', space=smem, size = 0x4, offset = 0x4, fixed_abs, tag = 'smem constant byte address 0x4 - core index']
  #allocation1 [shape = 'u32[144,128]{1,0:T(1,128)}', space=vmem, size = 0x12000, scoped, tag = 'internal scratch']
  %s0 = inlined_call_operand.hbm [shape: f32[16,128], index: 0, kind: input, shape index: {}]
  %s1 = inlined_call_operand.hbm [shape: bf16[128,128], index: 1, kind: input, shape index: {}]
  %s2 = inlined_call_operand.vmem [shape: f32[1,128], index: 2, kind: input, shape index: {}]
  %s3 = inlined_call_operand.hbm [shape: bf16[128,128], index: 3, kind: input, shape index: {}]
  %s4 = inlined_call_operand.vmem [shape: f32[1,128], index: 4, kind: input, shape index: {}]
  %s5 = inlined_call_operand.hbm [shape: bf16[128,128], index: 5, kind: input, shape index: {}]
  %s6 = inlined_call_operand.vmem [shape: f32[1,128], index: 6, kind: input, shape index: {}]
  %s7 = inlined_call_operand.hbm [shape: bf16[128,128], index: 7, kind: input, shape index: {}]
  %s8 = inlined_call_operand.vmem [shape: f32[1,128], index: 8, kind: input, shape index: {}]
  %s9 = inlined_call_operand.hbm [shape: bf16[128,128], index: 9, kind: input, shape index: {}]
  %s10 = inlined_call_operand.vmem [shape: f32[1,128], index: 10, kind: input, shape index: {}]
  %s11 = inlined_call_operand.hbm [shape: f32[16,128], index: 11, kind: output, shape index: {}]
  %s12 = sld [smem:[#allocation0]]
  $region78: #{tpu_custom_call.1} parent=0
    _
  %s14 = ssub.s32 1, %s12
  %s15 = scalar_select 0, %s14, %s12
  $region1: #{tpu_custom_call.1} parent=0
    #allocation2 [shape = 'u8[8192]{0}', space=vmem, size = 0x2000, scoped, tag = 'input window, operand 0, single buffered']
    #allocation3 [shape = 's32[1]{0}', space=sflag, size = 0x4, scoped, tag = 'scoped memory for tpu_custom_call.1']
    #allocation4 [shape = 's32[1]{0}', space=sflag, size = 0x4, scoped, tag = 'scoped memory for tpu_custom_call.1']
    #allocation5 [shape = 'u8[32768]{0}', space=vmem, size = 0x8000, scoped, tag = 'input window, operand 1, single buffered']
    #allocation6 [shape = 's32[1]{0}', space=sflag, size = 0x4, scoped, tag = 'scoped memory for tpu_custom_call.1']
    #allocation7 [shape = 'u8[32768]{0}', space=vmem, size = 0x8000, scoped, tag = 'input window, operand 3, single buffered']
    #allocation8 [shape = 'u8[32768]{0}', space=vmem, size = 0x8000, scoped, tag = 'input window, operand 5, single buffered']
    #allocation9 [shape = 's32[1]{0}', space=sflag, size = 0x4, scoped, tag = 'scoped memory for tpu_custom_call.1']
    #allocation10 [shape = 'u8[32768]{0}', space=vmem, size = 0x8000, scoped, tag = 'input window, operand 7, single buffered']
    #allocation11 [shape = 'u8[32768]{0}', space=vmem, size = 0x8000, scoped, tag = 'input window, operand 9, single buffered']
    #allocation12 [shape = 's32[1]{0}', space=sflag, size = 0x4, scoped, tag = 'scoped memory for tpu_custom_call.1']
    #allocation13 [shape = 'u8[8192]{0}', space=vmem, size = 0x2000, scoped, tag = 'output window, operand 0, single buffered']
    %16 = vsyncpa [#allocation3], 0
    %17 = vsyncpa [#allocation6], 0
    %18 = vsyncpa [#allocation9], 0
    %19 = vsyncpa [#allocation12], 0
    %20 = vsyncpa [#allocation4], 0
    // Predicated region
    $region2: #{tpu_custom_call.1} parent=1 // pred_check
      _
    $region3: #{tpu_custom_call.1} parent=1 // pred_check_branch
      %22 = sbr.rel (0) target = $region5
    $region4: #{tpu_custom_call.1} parent=1 // pred_region
      %s24 = ssub.s32 256, 256
      %25 = vsyncadd [#allocation3], %s24
      %s26 = sshll.u32 [#allocation2], 4
      %s27 = int_to_ptr.vmem [resolvable:$true] %s26
      %32 = dma.hbm_to_vmem [thread:$0]  %s0, 256, %s27, [#allocation3], 128, 128, 8
    $region5: #{tpu_custom_call.1} parent=1 // pred_fallthru
      _
    // Predicated region
    $region6: #{tpu_custom_call.1} parent=1 // pred_check
      _
    $region7: #{tpu_custom_call.1} parent=1 // pred_check_branch
      %34 = sbr.rel (0) target = $region9
    $region8: #{tpu_custom_call.1} parent=1 // pred_region
      %s36 = ssub.s32 1024, 1024
      %37 = vsyncadd [#allocation6], %s36
      %s38 = sshll.u32 [#allocation5], 4
      %s39 = int_to_ptr.vmem [resolvable:$true] %s38
      %44 = dma.hbm_to_vmem [thread:$0]  %s1, 1024, %s39, [#allocation6], 64, 64, 4
    $region9: #{tpu_custom_call.1} parent=1 // pred_fallthru
      _
    // Predicated region
    $region10: #{tpu_custom_call.1} parent=1 // pred_check
      _
    $region11: #{tpu_custom_call.1} parent=1 // pred_check_branch
      %46 = sbr.rel (0) target = $region13
    $region12: #{tpu_custom_call.1} parent=1 // pred_region
      _
    $region13: #{tpu_custom_call.1} parent=1 // pred_fallthru
      _
    // Predicated region
    $region14: #{tpu_custom_call.1} parent=1 // pred_check
      _
    $region15: #{tpu_custom_call.1} parent=1 // pred_check_branch
      %48 = sbr.rel (0) target = $region17
    $region16: #{tpu_custom_call.1} parent=1 // pred_region
      %s50 = ssub.s32 1024, 1024
      %51 = vsyncadd [#allocation6], %s50
      %s52 = sshll.u32 [#allocation7], 4
      %s53 = int_to_ptr.vmem [resolvable:$true] %s52
      %58 = dma.hbm_to_vmem [thread:$0]  %s3, 1024, %s53, [#allocation6], 64, 64, 4
    $region17: #{tpu_custom_call.1} parent=1 // pred_fallthru
      _
    // Predicated region
    $region18: #{tpu_custom_call.1} parent=1 // pred_check
      _
    $region19: #{tpu_custom_call.1} parent=1 // pred_check_branch
      %60 = sbr.rel (0) target = $region21
    $region20: #{tpu_custom_call.1} parent=1 // pred_region
      _
    $region21: #{tpu_custom_call.1} parent=1 // pred_fallthru
      _
    // Predicated region
    $region22: #{tpu_custom_call.1} parent=1 // pred_check
      _
    $region23: #{tpu_custom_call.1} parent=1 // pred_check_branch
      %62 = sbr.rel (0) target = $region25
    $region24: #{tpu_custom_call.1} parent=1 // pred_region
      %s64 = ssub.s32 1024, 1024
      %65 = vsyncadd [#allocation9], %s64
      %s66 = sshll.u32 [#allocation8], 4
      %s67 = int_to_ptr.vmem [resolvable:$true] %s66
      %72 = dma.hbm_to_vmem [thread:$0]  %s5, 1024, %s67, [#allocation9], 64, 64, 4
    $region25: #{tpu_custom_call.1} parent=1 // pred_fallthru
      _
    // Predicated region
    $region26: #{tpu_custom_call.1} parent=1 // pred_check
      _
    $region27: #{tpu_custom_call.1} parent=1 // pred_check_branch
      %74 = sbr.rel (0) target = $region29
    $region28: #{tpu_custom_call.1} parent=1 // pred_region
      _
    $region29: #{tpu_custom_call.1} parent=1 // pred_fallthru
      _
    // Predicated region
    $region30: #{tpu_custom_call.1} parent=1 // pred_check
      _
    $region31: #{tpu_custom_call.1} parent=1 // pred_check_branch
      %76 = sbr.rel (0) target = $region33
    $region32: #{tpu_custom_call.1} parent=1 // pred_region
      %s78 = ssub.s32 1024, 1024
      %79 = vsyncadd [#allocation9], %s78
      %s80 = sshll.u32 [#allocation10], 4
      %s81 = int_to_ptr.vmem [resolvable:$true] %s80
      %86 = dma.hbm_to_vmem [thread:$0]  %s7, 1024, %s81, [#allocation9], 64, 64, 4
    $region33: #{tpu_custom_call.1} parent=1 // pred_fallthru
      _
    // Predicated region
    $region34: #{tpu_custom_call.1} parent=1 // pred_check
      _
    $region35: #{tpu_custom_call.1} parent=1 // pred_check_branch
      %88 = sbr.rel (0) target = $region37
    $region36: #{tpu_custom_call.1} parent=1 // pred_region
      _
    $region37: #{tpu_custom_call.1} parent=1 // pred_fallthru
      _
    // Predicated region
    $region38: #{tpu_custom_call.1} parent=1 // pred_check
      _
    $region39: #{tpu_custom_call.1} parent=1 // pred_check_branch
      %90 = sbr.rel (0) target = $region41
    $region40: #{tpu_custom_call.1} parent=1 // pred_region
      %s92 = ssub.s32 1024, 1024
      %93 = vsyncadd [#allocation12], %s92
      %s94 = sshll.u32 [#allocation11], 4
      %s95 = int_to_ptr.vmem [resolvable:$true] %s94
      %100 = dma.hbm_to_vmem [thread:$0]  %s9, 1024, %s95, [#allocation12], 64, 64, 4
    $region41: #{tpu_custom_call.1} parent=1 // pred_fallthru
      _
    // Predicated region
    $region42: #{tpu_custom_call.1} parent=1 // pred_check
      _
    $region43: #{tpu_custom_call.1} parent=1 // pred_check_branch
      %102 = sbr.rel (0) target = $region45
    $region44: #{tpu_custom_call.1} parent=1 // pred_region
      _
    $region45: #{tpu_custom_call.1} parent=1 // pred_fallthru
      _
    // Predicated region
    $region46: #{tpu_custom_call.1} parent=1 // pred_check
      _
    $region47: #{tpu_custom_call.1} parent=1 // pred_check_branch
      %104 = sbr.rel (0) target = $region49
    $region48: #{tpu_custom_call.1} parent=1 // pred_region
      %105 = dma.done [#allocation3], 256
    $region49: #{tpu_custom_call.1} parent=1 // pred_fallthru
      _
    // Predicated region
    $region50: #{tpu_custom_call.1} parent=1 // pred_check
      _
    $region51: #{tpu_custom_call.1} parent=1 // pred_check_branch
      %107 = sbr.rel (0) target = $region53
    $region52: #{tpu_custom_call.1} parent=1 // pred_region
      %108 = dma.done [#allocation6], 1024
    $region53: #{tpu_custom_call.1} parent=1 // pred_fallthru
      _
    // Predicated region
    $region54: #{tpu_custom_call.1} parent=1 // pred_check
      _
    $region55: #{tpu_custom_call.1} parent=1 // pred_check_branch
      %110 = sbr.rel (0) target = $region57
    $region56: #{tpu_custom_call.1} parent=1 // pred_region
      %111 = dma.done [#allocation6], 1024
    $region57: #{tpu_custom_call.1} parent=1 // pred_fallthru
      _
    // Predicated region
    $region58: #{tpu_custom_call.1} parent=1 // pred_check
      _
    $region59: #{tpu_custom_call.1} parent=1 // pred_check_branch
      %113 = sbr.rel (0) target = $region61
    $region60: #{tpu_custom_call.1} parent=1 // pred_region
      %114 = dma.done [#allocation9], 1024
    $region61: #{tpu_custom_call.1} parent=1 // pred_fallthru
      _
    // Predicated region
    $region62: #{tpu_custom_call.1} parent=1 // pred_check
      _
    $region63: #{tpu_custom_call.1} parent=1 // pred_check_branch
      %116 = sbr.rel (0) target = $region65
    $region64: #{tpu_custom_call.1} parent=1 // pred_region
      %117 = dma.done [#allocation9], 1024
    $region65: #{tpu_custom_call.1} parent=1 // pred_fallthru
      _
    // Predicated region
    $region66: #{tpu_custom_call.1} parent=1 // pred_check
      _
    $region67: #{tpu_custom_call.1} parent=1 // pred_check_branch
      %119 = sbr.rel (0) target = $region69
    $region68: #{tpu_custom_call.1} parent=1 // pred_region
      %120 = dma.done [#allocation12], 1024
    $region69: #{tpu_custom_call.1} parent=1 // pred_fallthru
      _
    %v122 = vld [vmem:[#allocation2] sm:$0xff]
    %v123 = vld [vmem:[#allocation2 + $0x8] sm:$0xff]
    %v124 = vpack.c.bf16 %v123, %v122
    %v125 = vld [vmem:[#allocation5] sm:$0xf]
    %v126 = vld [vmem:[#allocation5 + $0x4] sm:$0xf]
    %v127 = vld [vmem:[#allocation5 + $0x8] sm:$0xf]
    %v128 = vld [vmem:[#allocation5 + $0xc] sm:$0xf]
    %v129 = vld [vmem:[#allocation5 + $0x10] sm:$0xf]
    %v130 = vld [vmem:[#allocation5 + $0x14] sm:$0xf]
    %v131 = vld [vmem:[#allocation5 + $0x18] sm:$0xf]
    %v132 = vld [vmem:[#allocation5 + $0x1c] sm:$0xf]
    %v133 = vld [vmem:[#allocation5 + $0x20] sm:$0xf]
    %v134 = vld [vmem:[#allocation5 + $0x24] sm:$0xf]
    %v135 = vld [vmem:[#allocation5 + $0x28] sm:$0xf]
    %v136 = vld [vmem:[#allocation5 + $0x2c] sm:$0xf]
    %v137 = vld [vmem:[#allocation5 + $0x30] sm:$0xf]
    %v138 = vld [vmem:[#allocation5 + $0x34] sm:$0xf]
    %v139 = vld [vmem:[#allocation5 + $0x38] sm:$0xf]
    %v140 = vld [vmem:[#allocation5 + $0x3c] sm:$0xf]
    %v141 = vld [vmem:[%s2] sm:$0x1]
    %v143 = vlaneseq
    %v144 = vshrl.u32 %v143, 7
    %v145 = vsub.s32 0, %v144
    %v146 = vrot.slane %v141, %v145
    %v164 = vunpack.c.l.b16 %v125
    %v165 = vunpack.c.l.b16 %v126
    %v166 = vunpack.c.l.b16 %v127
    %v167 = vunpack.c.l.b16 %v128
    %v168 = vunpack.c.l.b16 %v129
    %v169 = vunpack.c.l.b16 %v130
    %v170 = vunpack.c.l.b16 %v131
    %v171 = vunpack.c.l.b16 %v132
    %v172 = vunpack.c.l.b16 %v133
    %v173 = vunpack.c.l.b16 %v134
    %v174 = vunpack.c.l.b16 %v135
    %v175 = vunpack.c.l.b16 %v136
    %v176 = vunpack.c.l.b16 %v137
    %v177 = vunpack.c.l.b16 %v138
    %v178 = vunpack.c.l.b16 %v139
    %v179 = vunpack.c.l.b16 %v140
    %v180 = vpack.c.b16 %v165, %v164
    %v181 = vpack.c.b16 %v167, %v166
    %v182 = vpack.c.b16 %v169, %v168
    %v183 = vpack.c.b16 %v171, %v170
    %v184 = vpack.c.b16 %v173, %v172
    %v185 = vpack.c.b16 %v175, %v174
    %v186 = vpack.c.b16 %v177, %v176
    %v187 = vpack.c.b16 %v179, %v178
    %196 = vmatprep.subr.bf16.mxu0 0
    %197 = vmatpush1.bf16.msra.mxu0 %v180
    %198 = vmatprep.subr.bf16.mxu0 0
    %199 = vmatpush1.bf16.msra.mxu0 %v181
    %200 = vmatprep.subr.bf16.mxu0 0
    %201 = vmatpush1.bf16.msra.mxu0 %v182
    %202 = vmatprep.subr.bf16.mxu0 0
    %203 = vmatpush1.bf16.msra.mxu0 %v183
    %204 = vmatprep.subr.bf16.mxu0 0
    %205 = vmatpush1.bf16.msra.mxu0 %v184
    %206 = vmatprep.subr.bf16.mxu0 0
    %207 = vmatpush1.bf16.msra.mxu0 %v185
    %208 = vmatprep.subr.bf16.mxu0 0
    %209 = vmatpush1.bf16.msra.mxu0 %v186
    %210 = vmatprep.subr.bf16.mxu0 0
    %211 = vmatpush1.bf16.msra.mxu0 %v187
    %212 = vmatprep.subr.bf16.mxu0 0
    %213 = vmatpush1.bf16.msra.mxu0 0
    %214 = vmatprep.subr.bf16.mxu0 0
    %215 = vmatpush1.bf16.msra.mxu0 0
    %216 = vmatprep.subr.bf16.mxu0 0
    %217 = vmatpush1.bf16.msra.mxu0 0
    %218 = vmatprep.subr.bf16.mxu0 0
    %219 = vmatpush1.bf16.msra.mxu0 0
    %220 = vmatprep.subr.bf16.mxu0 0
    %221 = vmatpush1.bf16.msra.mxu0 0
    %222 = vmatprep.subr.bf16.mxu0 0
    %223 = vmatpush1.bf16.msra.mxu0 0
    %224 = vmatprep.subr.bf16.mxu0 0
    %225 = vmatpush1.bf16.msra.mxu0 0
    %226 = vmatprep.subr.bf16.mxu0 0
    %227 = vmatpush1.bf16.msra.mxu0 0
    %228 = vmatprep.mubr.bf16.mxu0 0
    %229 = vmatmul.mubr.bf16.gmra.mrb[0].mxu0 %v124
    %v230 = vpop.f32.mrb[0].mxu0
    %v231 = vadd.f32 %v146, %v230
    %v232 = vpop.f32.mrb[0].mxu0
    %v233 = vpop.f32.mrb[0].mxu0
    %v234 = vadd.f32 %v146, %v233
    %v235 = vpop.f32.mrb[0].mxu0
    %236 = vdwg.mxu0
    %v237 = vmul.f32 %v231, 0.01
    %v238 = vmul.f32 %v234, 0.01
    %v239 = vmax.f32 %v231, %v237
    %v240 = vmax.f32 %v234, %v238
    %v241 = vpack.c.bf16 %v240, %v239
    %v242 = vld [vmem:[#allocation7] sm:$0xf]
    %v243 = vld [vmem:[#allocation7 + $0x4] sm:$0xf]
    %v244 = vld [vmem:[#allocation7 + $0x8] sm:$0xf]
    %v245 = vld [vmem:[#allocation7 + $0xc] sm:$0xf]
    %v246 = vld [vmem:[#allocation7 + $0x10] sm:$0xf]
    %v247 = vld [vmem:[#allocation7 + $0x14] sm:$0xf]
    %v248 = vld [vmem:[#allocation7 + $0x18] sm:$0xf]
    %v249 = vld [vmem:[#allocation7 + $0x1c] sm:$0xf]
    %v250 = vld [vmem:[#allocation7 + $0x20] sm:$0xf]
    %v251 = vld [vmem:[#allocation7 + $0x24] sm:$0xf]
    %v252 = vld [vmem:[#allocation7 + $0x28] sm:$0xf]
    %v253 = vld [vmem:[#allocation7 + $0x2c] sm:$0xf]
    %v254 = vld [vmem:[#allocation7 + $0x30] sm:$0xf]
    %v255 = vld [vmem:[#allocation7 + $0x34] sm:$0xf]
    %v256 = vld [vmem:[#allocation7 + $0x38] sm:$0xf]
    %v257 = vld [vmem:[#allocation7 + $0x3c] sm:$0xf]
    %v258 = vld [vmem:[%s4] sm:$0x1]
    %v260 = vlaneseq
    %v261 = vshrl.u32 %v260, 7
    %v262 = vsub.s32 0, %v261
    %v263 = vrot.slane %v258, %v262
    %v281 = vunpack.c.l.b16 %v242
    %v282 = vunpack.c.l.b16 %v243
    %v283 = vunpack.c.l.b16 %v244
    %v284 = vunpack.c.l.b16 %v245
    %v285 = vunpack.c.l.b16 %v246
    %v286 = vunpack.c.l.b16 %v247
    %v287 = vunpack.c.l.b16 %v248
    %v288 = vunpack.c.l.b16 %v249
    %v289 = vunpack.c.l.b16 %v250
    %v290 = vunpack.c.l.b16 %v251
    %v291 = vunpack.c.l.b16 %v252
    %v292 = vunpack.c.l.b16 %v253
    %v293 = vunpack.c.l.b16 %v254
    %v294 = vunpack.c.l.b16 %v255
    %v295 = vunpack.c.l.b16 %v256
    %v296 = vunpack.c.l.b16 %v257
    %v297 = vpack.c.b16 %v282, %v281
    %v298 = vpack.c.b16 %v284, %v283
    %v299 = vpack.c.b16 %v286, %v285
    %v300 = vpack.c.b16 %v288, %v287
    %v301 = vpack.c.b16 %v290, %v289
    %v302 = vpack.c.b16 %v292, %v291
    %v303 = vpack.c.b16 %v294, %v293
    %v304 = vpack.c.b16 %v296, %v295
    %313 = vmatprep.subr.bf16.mxu0 0
    %314 = vmatpush1.bf16.msra.mxu0 %v297
    %315 = vmatprep.subr.bf16.mxu0 0
    %316 = vmatpush1.bf16.msra.mxu0 %v298
    %317 = vmatprep.subr.bf16.mxu0 0
    %318 = vmatpush1.bf16.msra.mxu0 %v299
    %319 = vmatprep.subr.bf16.mxu0 0
    %320 = vmatpush1.bf16.msra.mxu0 %v300
    %321 = vmatprep.subr.bf16.mxu0 0
    %322 = vmatpush1.bf16.msra.mxu0 %v301
    %323 = vmatprep.subr.bf16.mxu0 0
    %324 = vmatpush1.bf16.msra.mxu0 %v302
    %325 = vmatprep.subr.bf16.mxu0 0
    %326 = vmatpush1.bf16.msra.mxu0 %v303
    %327 = vmatprep.subr.bf16.mxu0 0
    %328 = vmatpush1.bf16.msra.mxu0 %v304
    %329 = vmatprep.subr.bf16.mxu0 0
    %330 = vmatpush1.bf16.msra.mxu0 0
    %331 = vmatprep.subr.bf16.mxu0 0
    %332 = vmatpush1.bf16.msra.mxu0 0
    %333 = vmatprep.subr.bf16.mxu0 0
    %334 = vmatpush1.bf16.msra.mxu0 0
    %335 = vmatprep.subr.bf16.mxu0 0
    %336 = vmatpush1.bf16.msra.mxu0 0
    %337 = vmatprep.subr.bf16.mxu0 0
    %338 = vmatpush1.bf16.msra.mxu0 0
    %339 = vmatprep.subr.bf16.mxu0 0
    %340 = vmatpush1.bf16.msra.mxu0 0
    %341 = vmatprep.subr.bf16.mxu0 0
    %342 = vmatpush1.bf16.msra.mxu0 0
    %343 = vmatprep.subr.bf16.mxu0 0
    %344 = vmatpush1.bf16.msra.mxu0 0
    %345 = vmatprep.mubr.bf16.mxu0 0
    %346 = vmatmul.mubr.bf16.gmra.mrb[0].mxu0 %v241
    %v347 = vpop.f32.mrb[0].mxu0
    %v348 = vadd.f32 %v263, %v347
    %v349 = vpop.f32.mrb[0].mxu0
    %v350 = vpop.f32.mrb[0].mxu0
    %v351 = vadd.f32 %v263, %v350
    %v352 = vpop.f32.mrb[0].mxu0
    %353 = vdwg.mxu0
    %v354 = vmul.f32 %v348, 0.01
    %v355 = vmul.f32 %v351, 0.01
    %v356 = vmax.f32 %v348, %v354
    %v357 = vmax.f32 %v351, %v355
    %v358 = vpack.c.bf16 %v357, %v356
    %v359 = vld [vmem:[#allocation8] sm:$0xf]
    %v360 = vld [vmem:[#allocation8 + $0x4] sm:$0xf]
    %v361 = vld [vmem:[#allocation8 + $0x8] sm:$0xf]
    %v362 = vld [vmem:[#allocation8 + $0xc] sm:$0xf]
    %v363 = vld [vmem:[#allocation8 + $0x10] sm:$0xf]
    %v364 = vld [vmem:[#allocation8 + $0x14] sm:$0xf]
    %v365 = vld [vmem:[#allocation8 + $0x18] sm:$0xf]
    %v366 = vld [vmem:[#allocation8 + $0x1c] sm:$0xf]
    %v367 = vld [vmem:[#allocation8 + $0x20] sm:$0xf]
    %v368 = vld [vmem:[#allocation8 + $0x24] sm:$0xf]
    %v369 = vld [vmem:[#allocation8 + $0x28] sm:$0xf]
    %v370 = vld [vmem:[#allocation8 + $0x2c] sm:$0xf]
    %v371 = vld [vmem:[#allocation8 + $0x30] sm:$0xf]
    %v372 = vld [vmem:[#allocation8 + $0x34] sm:$0xf]
    %v373 = vld [vmem:[#allocation8 + $0x38] sm:$0xf]
    %v374 = vld [vmem:[#allocation8 + $0x3c] sm:$0xf]
    %v375 = vld [vmem:[%s6] sm:$0x1]
    %v377 = vlaneseq
    %v378 = vshrl.u32 %v377, 7
    %v379 = vsub.s32 0, %v378
    %v380 = vrot.slane %v375, %v379
    %v398 = vunpack.c.l.b16 %v359
    %v399 = vunpack.c.l.b16 %v360
    %v400 = vunpack.c.l.b16 %v361
    %v401 = vunpack.c.l.b16 %v362
    %v402 = vunpack.c.l.b16 %v363
    %v403 = vunpack.c.l.b16 %v364
    %v404 = vunpack.c.l.b16 %v365
    %v405 = vunpack.c.l.b16 %v366
    %v406 = vunpack.c.l.b16 %v367
    %v407 = vunpack.c.l.b16 %v368
    %v408 = vunpack.c.l.b16 %v369
    %v409 = vunpack.c.l.b16 %v370
    %v410 = vunpack.c.l.b16 %v371
    %v411 = vunpack.c.l.b16 %v372
    %v412 = vunpack.c.l.b16 %v373
    %v413 = vunpack.c.l.b16 %v374
    %v414 = vpack.c.b16 %v399, %v398
    %v415 = vpack.c.b16 %v401, %v400
    %v416 = vpack.c.b16 %v403, %v402
    %v417 = vpack.c.b16 %v405, %v404
    %v418 = vpack.c.b16 %v407, %v406
    %v419 = vpack.c.b16 %v409, %v408
    %v420 = vpack.c.b16 %v411, %v410
    %v421 = vpack.c.b16 %v413, %v412
    %430 = vmatprep.subr.bf16.mxu0 0
    %431 = vmatpush1.bf16.msra.mxu0 %v414
    %432 = vmatprep.subr.bf16.mxu0 0
    %433 = vmatpush1.bf16.msra.mxu0 %v415
    %434 = vmatprep.subr.bf16.mxu0 0
    %435 = vmatpush1.bf16.msra.mxu0 %v416
    %436 = vmatprep.subr.bf16.mxu0 0
    %437 = vmatpush1.bf16.msra.mxu0 %v417
    %438 = vmatprep.subr.bf16.mxu0 0
    %439 = vmatpush1.bf16.msra.mxu0 %v418
    %440 = vmatprep.subr.bf16.mxu0 0
    %441 = vmatpush1.bf16.msra.mxu0 %v419
    %442 = vmatprep.subr.bf16.mxu0 0
    %443 = vmatpush1.bf16.msra.mxu0 %v420
    %444 = vmatprep.subr.bf16.mxu0 0
    %445 = vmatpush1.bf16.msra.mxu0 %v421
    %446 = vmatprep.subr.bf16.mxu0 0
    %447 = vmatpush1.bf16.msra.mxu0 0
    %448 = vmatprep.subr.bf16.mxu0 0
    %449 = vmatpush1.bf16.msra.mxu0 0
    %450 = vmatprep.subr.bf16.mxu0 0
    %451 = vmatpush1.bf16.msra.mxu0 0
    %452 = vmatprep.subr.bf16.mxu0 0
    %453 = vmatpush1.bf16.msra.mxu0 0
    %454 = vmatprep.subr.bf16.mxu0 0
    %455 = vmatpush1.bf16.msra.mxu0 0
    %456 = vmatprep.subr.bf16.mxu0 0
    %457 = vmatpush1.bf16.msra.mxu0 0
    %458 = vmatprep.subr.bf16.mxu0 0
    %459 = vmatpush1.bf16.msra.mxu0 0
    %460 = vmatprep.subr.bf16.mxu0 0
    %461 = vmatpush1.bf16.msra.mxu0 0
    %462 = vmatprep.mubr.bf16.mxu0 0
    %463 = vmatmul.mubr.bf16.gmra.mrb[0].mxu0 %v358
    %v464 = vpop.f32.mrb[0].mxu0
    %v465 = vadd.f32 %v380, %v464
    %v466 = vpop.f32.mrb[0].mxu0
    %v467 = vpop.f32.mrb[0].mxu0
    %v468 = vadd.f32 %v380, %v467
    %v469 = vpop.f32.mrb[0].mxu0
    %470 = vdwg.mxu0
    %v471 = vmul.f32 %v465, 0.01
    %v472 = vmul.f32 %v468, 0.01
    %v473 = vmax.f32 %v465, %v471
    %v474 = vmax.f32 %v468, %v472
    %v475 = vpack.c.bf16 %v474, %v473
    %v476 = vld [vmem:[#allocation10] sm:$0xf]
    %v477 = vld [vmem:[#allocation10 + $0x4] sm:$0xf]
    %v478 = vld [vmem:[#allocation10 + $0x8] sm:$0xf]
    %v479 = vld [vmem:[#allocation10 + $0xc] sm:$0xf]
    %v480 = vld [vmem:[#allocation10 + $0x10] sm:$0xf]
    %v481 = vld [vmem:[#allocation10 + $0x14] sm:$0xf]
    %v482 = vld [vmem:[#allocation10 + $0x18] sm:$0xf]
    %v483 = vld [vmem:[#allocation10 + $0x1c] sm:$0xf]
    %v484 = vld [vmem:[#allocation10 + $0x20] sm:$0xf]
    %v485 = vld [vmem:[#allocation10 + $0x24] sm:$0xf]
    %v486 = vld [vmem:[#allocation10 + $0x28] sm:$0xf]
    %v487 = vld [vmem:[#allocation10 + $0x2c] sm:$0xf]
    %v488 = vld [vmem:[#allocation10 + $0x30] sm:$0xf]
    %v489 = vld [vmem:[#allocation10 + $0x34] sm:$0xf]
    %v490 = vld [vmem:[#allocation10 + $0x38] sm:$0xf]
    %v491 = vld [vmem:[#allocation10 + $0x3c] sm:$0xf]
    %v492 = vld [vmem:[%s8] sm:$0x1]
    %v494 = vlaneseq
    %v495 = vshrl.u32 %v494, 7
    %v496 = vsub.s32 0, %v495
    %v497 = vrot.slane %v492, %v496
    %v515 = vunpack.c.l.b16 %v476
    %v516 = vunpack.c.l.b16 %v477
    %v517 = vunpack.c.l.b16 %v478
    %v518 = vunpack.c.l.b16 %v479
    %v519 = vunpack.c.l.b16 %v480
    %v520 = vunpack.c.l.b16 %v481
    %v521 = vunpack.c.l.b16 %v482
    %v522 = vunpack.c.l.b16 %v483
    %v523 = vunpack.c.l.b16 %v484
    %v524 = vunpack.c.l.b16 %v485
    %v525 = vunpack.c.l.b16 %v486
    %v526 = vunpack.c.l.b16 %v487
    %v527 = vunpack.c.l.b16 %v488
    %v528 = vunpack.c.l.b16 %v489
    %v529 = vunpack.c.l.b16 %v490
    %v530 = vunpack.c.l.b16 %v491
    %v531 = vpack.c.b16 %v516, %v515
    %v532 = vpack.c.b16 %v518, %v517
    %v533 = vpack.c.b16 %v520, %v519
    %v534 = vpack.c.b16 %v522, %v521
    %v535 = vpack.c.b16 %v524, %v523
    %v536 = vpack.c.b16 %v526, %v525
    %v537 = vpack.c.b16 %v528, %v527
    %v538 = vpack.c.b16 %v530, %v529
    %547 = vmatprep.subr.bf16.mxu0 0
    %548 = vmatpush1.bf16.msra.mxu0 %v531
    %549 = vmatprep.subr.bf16.mxu0 0
    %550 = vmatpush1.bf16.msra.mxu0 %v532
    %551 = vmatprep.subr.bf16.mxu0 0
    %552 = vmatpush1.bf16.msra.mxu0 %v533
    %553 = vmatprep.subr.bf16.mxu0 0
    %554 = vmatpush1.bf16.msra.mxu0 %v534
    %555 = vmatprep.subr.bf16.mxu0 0
    %556 = vmatpush1.bf16.msra.mxu0 %v535
    %557 = vmatprep.subr.bf16.mxu0 0
    %558 = vmatpush1.bf16.msra.mxu0 %v536
    %559 = vmatprep.subr.bf16.mxu0 0
    %560 = vmatpush1.bf16.msra.mxu0 %v537
    %561 = vmatprep.subr.bf16.mxu0 0
    %562 = vmatpush1.bf16.msra.mxu0 %v538
    %563 = vmatprep.subr.bf16.mxu0 0
    %564 = vmatpush1.bf16.msra.mxu0 0
    %565 = vmatprep.subr.bf16.mxu0 0
    %566 = vmatpush1.bf16.msra.mxu0 0
    %567 = vmatprep.subr.bf16.mxu0 0
    %568 = vmatpush1.bf16.msra.mxu0 0
    %569 = vmatprep.subr.bf16.mxu0 0
    %570 = vmatpush1.bf16.msra.mxu0 0
    %571 = vmatprep.subr.bf16.mxu0 0
    %572 = vmatpush1.bf16.msra.mxu0 0
    %573 = vmatprep.subr.bf16.mxu0 0
    %574 = vmatpush1.bf16.msra.mxu0 0
    %575 = vmatprep.subr.bf16.mxu0 0
    %576 = vmatpush1.bf16.msra.mxu0 0
    %577 = vmatprep.subr.bf16.mxu0 0
    %578 = vmatpush1.bf16.msra.mxu0 0
    %579 = vmatprep.mubr.bf16.mxu0 0
    %580 = vmatmul.mubr.bf16.gmra.mrb[0].mxu0 %v475
    %v581 = vpop.f32.mrb[0].mxu0
    %v582 = vadd.f32 %v497, %v581
    %v583 = vpop.f32.mrb[0].mxu0
    %v584 = vpop.f32.mrb[0].mxu0
    %v585 = vadd.f32 %v497, %v584
    %v586 = vpop.f32.mrb[0].mxu0
    %587 = vdwg.mxu0
    %v588 = vmul.f32 %v582, 0.01
    %v589 = vmul.f32 %v585, 0.01
    %v590 = vmax.f32 %v582, %v588
    %v591 = vmax.f32 %v585, %v589
    %v592 = vpack.c.bf16 %v591, %v590
    %v593 = vld [vmem:[#allocation11] sm:$0xf]
    %v594 = vld [vmem:[#allocation11 + $0x4] sm:$0xf]
    %v595 = vld [vmem:[#allocation11 + $0x8] sm:$0xf]
    %v596 = vld [vmem:[#allocation11 + $0xc] sm:$0xf]
    %v597 = vld [vmem:[#allocation11 + $0x10] sm:$0xf]
    %v598 = vld [vmem:[#allocation11 + $0x14] sm:$0xf]
    %v599 = vld [vmem:[#allocation11 + $0x18] sm:$0xf]
    %v600 = vld [vmem:[#allocation11 + $0x1c] sm:$0xf]
    %v601 = vld [vmem:[#allocation11 + $0x20] sm:$0xf]
    %v602 = vld [vmem:[#allocation11 + $0x24] sm:$0xf]
    %v603 = vld [vmem:[#allocation11 + $0x28] sm:$0xf]
    %v604 = vld [vmem:[#allocation11 + $0x2c] sm:$0xf]
    %v605 = vld [vmem:[#allocation11 + $0x30] sm:$0xf]
    %v606 = vld [vmem:[#allocation11 + $0x34] sm:$0xf]
    %v607 = vld [vmem:[#allocation11 + $0x38] sm:$0xf]
    %v608 = vld [vmem:[#allocation11 + $0x3c] sm:$0xf]
    %v609 = vld [vmem:[%s10] sm:$0x1]
    %v611 = vlaneseq
    %v612 = vshrl.u32 %v611, 7
    %v613 = vsub.s32 0, %v612
    %v614 = vrot.slane %v609, %v613
    %v632 = vunpack.c.l.b16 %v593
    %v633 = vunpack.c.l.b16 %v594
    %v634 = vunpack.c.l.b16 %v595
    %v635 = vunpack.c.l.b16 %v596
    %v636 = vunpack.c.l.b16 %v597
    %v637 = vunpack.c.l.b16 %v598
    %v638 = vunpack.c.l.b16 %v599
    %v639 = vunpack.c.l.b16 %v600
    %v640 = vunpack.c.l.b16 %v601
    %v641 = vunpack.c.l.b16 %v602
    %v642 = vunpack.c.l.b16 %v603
    %v643 = vunpack.c.l.b16 %v604
    %v644 = vunpack.c.l.b16 %v605
    %v645 = vunpack.c.l.b16 %v606
    %v646 = vunpack.c.l.b16 %v607
    %v647 = vunpack.c.l.b16 %v608
    %v648 = vpack.c.b16 %v633, %v632
    %v649 = vpack.c.b16 %v635, %v634
    %v650 = vpack.c.b16 %v637, %v636
    %v651 = vpack.c.b16 %v639, %v638
    %v652 = vpack.c.b16 %v641, %v640
    %v653 = vpack.c.b16 %v643, %v642
    %v654 = vpack.c.b16 %v645, %v644
    %v655 = vpack.c.b16 %v647, %v646
    %664 = vmatprep.subr.bf16.mxu0 0
    %665 = vmatpush1.bf16.msra.mxu0 %v648
    %666 = vmatprep.subr.bf16.mxu0 0
    %667 = vmatpush1.bf16.msra.mxu0 %v649
    %668 = vmatprep.subr.bf16.mxu0 0
    %669 = vmatpush1.bf16.msra.mxu0 %v650
    %670 = vmatprep.subr.bf16.mxu0 0
    %671 = vmatpush1.bf16.msra.mxu0 %v651
    %672 = vmatprep.subr.bf16.mxu0 0
    %673 = vmatpush1.bf16.msra.mxu0 %v652
    %674 = vmatprep.subr.bf16.mxu0 0
    %675 = vmatpush1.bf16.msra.mxu0 %v653
    %676 = vmatprep.subr.bf16.mxu0 0
    %677 = vmatpush1.bf16.msra.mxu0 %v654
    %678 = vmatprep.subr.bf16.mxu0 0
    %679 = vmatpush1.bf16.msra.mxu0 %v655
    %680 = vmatprep.subr.bf16.mxu0 0
    %681 = vmatpush1.bf16.msra.mxu0 0
    %682 = vmatprep.subr.bf16.mxu0 0
    %683 = vmatpush1.bf16.msra.mxu0 0
    %684 = vmatprep.subr.bf16.mxu0 0
    %685 = vmatpush1.bf16.msra.mxu0 0
    %686 = vmatprep.subr.bf16.mxu0 0
    %687 = vmatpush1.bf16.msra.mxu0 0
    %688 = vmatprep.subr.bf16.mxu0 0
    %689 = vmatpush1.bf16.msra.mxu0 0
    %690 = vmatprep.subr.bf16.mxu0 0
    %691 = vmatpush1.bf16.msra.mxu0 0
    %692 = vmatprep.subr.bf16.mxu0 0
    %693 = vmatpush1.bf16.msra.mxu0 0
    %694 = vmatprep.subr.bf16.mxu0 0
    %695 = vmatpush1.bf16.msra.mxu0 0
    %696 = vmatprep.mubr.bf16.mxu0 0
    %697 = vmatmul.mubr.bf16.gmra.mrb[0].mxu0 %v592
    %v698 = vpop.f32.mrb[0].mxu0
    %v699 = vadd.f32 %v614, %v698
    %v700 = vpop.f32.mrb[0].mxu0
    %v701 = vpop.f32.mrb[0].mxu0
    %v702 = vadd.f32 %v614, %v701
    %v703 = vpop.f32.mrb[0].mxu0
    %704 = vdwg.mxu0
    %705 = vmax.xlane.f32.xlu0 %v699
    %v706 = vpop.xlane.xlu0 %705
    %707 = vmax.xlane.f32.xlu0 %v702
    %v708 = vpop.xlane.xlu0 %707
    %v709 = vsub.f32 %v699, %v706
    %v710 = vsub.f32 %v702, %v708
    %v711 = vmul.f32 %v709, 1.442695
    %v712 = vpow.pop %v711
    %v713 = vmul.f32 %v710, 1.442695
    %v714 = vpow.pop %v713
    %715 = vadd.xlane.f32.xlu0 %v712
    %v716 = vpop.xlane.xlu0 %715
    %717 = vadd.xlane.f32.xlu0 %v714
    %v718 = vpop.xlane.xlu0 %717
    %v719 = vrcp.pop %v716
    %v720 = vrcp.pop %v718
    %v721 = vmul.f32 %v712, %v719
    %v722 = vmul.f32 %v714, %v720
    %723 = vst [vmem:[#allocation13] sm:$0xff] %v721
    %724 = vst [vmem:[#allocation13 + $0x8] sm:$0xff] %v722
    // Predicated region
    $region70: #{tpu_custom_call.1} parent=1 // pred_check
      _
    $region71: #{tpu_custom_call.1} parent=1 // pred_check_branch
      %726 = sbr.rel (0) target = $region73
    $region72: #{tpu_custom_call.1} parent=1 // pred_region
      %s728 = ssub.s32 256, 256
      %729 = vsyncadd [#allocation4], %s728
      %s730 = sshll.u32 [#allocation13], 4
      %s731 = int_to_ptr.vmem [resolvable:$true] %s730
      %736 = dma.vmem_to_hbm [thread:$0]  %s731, 256, %s11, [#allocation4], 128, 128, 8
    $region73: #{tpu_custom_call.1} parent=1 // pred_fallthru
      _
    // Predicated region
    $region74: #{tpu_custom_call.1} parent=1 // pred_check
      _
    $region75: #{tpu_custom_call.1} parent=1 // pred_check_branch
      %738 = sbr.rel (0) target = $region77
    $region76: #{tpu_custom_call.1} parent=1 // pred_region
      %739 = dma.done [#allocation4], 256
    $region77: #{tpu_custom_call.1} parent=1 // pred_fallthru
      _
    %740 = vsyncpa [#allocation3], 1
    %741 = vsyncpa [#allocation6], 1
    %742 = vsyncpa [#allocation9], 1
    %743 = vsyncpa [#allocation12], 1
    %744 = vsyncpa [#allocation4], 1

</llo_original>
